<compile_context>
chip_gen: v5e
topology: v5e:2x2
jax: 0.10.0
libtpu: 0.0.40
codegen_flags: <defaults>
</compile_context>

<pallas_src>
import math

import jax
import jax.numpy as jnp
from jax.experimental import pallas as pl
from jax.experimental.pallas import tpu as pltpu

_EPS = 1e-12
_LOG2 = math.log(2.0)
_LANES = 128
_SUBLANES = 8
_TARGET_BLOCK_ROWS = 2048      # (2048, 128) f32 block == 1 MiB per input


def _cdiv(a, b):
    return -(-a // b)


def _round_up(a, b):
    return _cdiv(a, b) * b


def _logcosh_stable(d):
    # log(cosh(d)) = logaddexp(d, -d) - log(2) = |d| + log1p(exp(-2|d|)) - log(2)
    a = jnp.abs(d)
    return a + jnp.log1p(jnp.exp(-2.0 * a)) - _LOG2


def _mean_kernel(src_ref, tgt_ref, partial_ref, acc_ref):
    """Lane-parallel partial sums of logcosh, accumulated over the reduction axis."""
    k = pl.program_id(1)

    @pl.when(k == 0)
    def _():
        acc_ref[...] = jnp.zeros_like(acc_ref)

    d = src_ref[...].astype(jnp.float32) - tgt_ref[...].astype(jnp.float32) + _EPS
    lc = _logcosh_stable(d)
    # One sublane reduce per (large) tile; the final 128-lane cross-lane
    # reduce happens once, on the tiny partials, outside the kernel.
    acc_ref[...] += jnp.sum(lc, axis=0, keepdims=True)

    @pl.when(k == pl.num_programs(1) - 1)
    def _():
        partial_ref[0] = acc_ref[...]


def _elem_kernel(src_ref, tgt_ref, out_ref):
    d = src_ref[...].astype(jnp.float32) - tgt_ref[...].astype(jnp.float32) + _EPS
    out_ref[...] = _logcosh_stable(d).astype(out_ref.dtype)


def _as_slab(x, total_rows):
    """Flatten to 1-D, zero-pad to total_rows * 128, view as (total_rows, 128)."""
    flat = x.reshape(-1)
    pad = total_rows * _LANES - flat.shape[0]
    if pad:
        flat = jnp.pad(flat, (0, pad))
    return flat.reshape(total_rows, _LANES)


def log_cosh_loss(src, tgt, reduction="mean"):
    """JAX/Pallas equivalent of LogCoshLoss.forward(src, tgt)."""
    # TODO(synk): BaseLoss._prep_inputs / registry plumbing is framework glue
    # and is not reproduced here; src/tgt are assumed already extracted.
    assert reduction in {"mean", "none"}
    assert src.shape == tgt.shape

    n = int(src.size)
    itemsize = jnp.dtype(src.dtype).itemsize
    rows = _round_up(_cdiv(n, _LANES), _SUBLANES)
    block_rows = min(_TARGET_BLOCK_ROWS, rows)
    n_tiles = _cdiv(rows, block_rows)

    if reduction == "mean":
        # Split tiles over 2 "parallel" chunks so v7x's two TensorCores can
        # each own an independent partial reduction (no-op on v5e/v6e).
        n_chunks = 2 if n_tiles >= 2 else 1
        tiles_per_chunk = _cdiv(n_tiles, n_chunks)
        total_rows = n_chunks * tiles_per_chunk * block_rows
        src2d = _as_slab(src, total_rows)
        tgt2d = _as_slab(tgt, total_rows)

        def in_map(i, k):
            return (i * tiles_per_chunk + k, 0)

        partials = pl.pallas_call(
            _mean_kernel,
            out_shape=jax.ShapeDtypeStruct((n_chunks, 1, _LANES), jnp.float32),
            grid=(n_chunks, tiles_per_chunk),
            in_specs=[
                pl.BlockSpec((block_rows, _LANES), in_map),
                pl.BlockSpec((block_rows, _LANES), in_map),
            ],
            out_specs=pl.BlockSpec((1, 1, _LANES), lambda i, k: (i, 0, 0)),
            scratch_shapes=[pltpu.VMEM((1, _LANES), jnp.float32)],
            compiler_params=pltpu.CompilerParams(
                dimension_semantics=("parallel", "arbitrary"),
                allow_input_fusion=[True, True],
            ),
            cost_estimate=pl.CostEstimate(
                flops=8 * n,
                transcendentals=2 * n,
                bytes_accessed=2 * n * itemsize + n_chunks * _LANES * 4,
            ),
        )(src2d, tgt2d)
        return (jnp.sum(partials) / n).astype(src.dtype)

    # reduction == "none": element-wise logcosh, same shape as the inputs.
    total_rows = n_tiles * block_rows
    src2d = _as_slab(src, total_rows)
    tgt2d = _as_slab(tgt, total_rows)
    out2d = pl.pallas_call(
        _elem_kernel,
        out_shape=jax.ShapeDtypeStruct((total_rows, _LANES), src.dtype),
        grid=(n_tiles,),
        in_specs=[
            pl.BlockSpec((block_rows, _LANES), lambda i: (i, 0)),
            pl.BlockSpec((block_rows, _LANES), lambda i: (i, 0)),
        ],
        out_specs=pl.BlockSpec((block_rows, _LANES), lambda i: (i, 0)),
        compiler_params=pltpu.CompilerParams(
            dimension_semantics=("parallel",),
            allow_input_fusion=[True, True],
        ),
        cost_estimate=pl.CostEstimate(
            flops=8 * n,
            transcendentals=2 * n,
            bytes_accessed=3 * n * itemsize,
        ),
    )(src2d, tgt2d)
    return out2d.reshape(-1)[:n].reshape(src.shape)


if __name__ == "__main__":
    key = jax.random.PRNGKey(0)
    k_src, k_tgt = jax.random.split(key)

    # Small regression-style inputs (NCHW prediction / target pair).
    shape = (2, 4, 16, 16)
    src = jax.random.normal(k_src, shape, dtype=jnp.float32)
    tgt = jax.random.normal(k_tgt, shape, dtype=jnp.float32)

    # Pure-JAX reference.
    d = src.astype(jnp.float32) - tgt.astype(jnp.float32) + _EPS
    ref_mean = jnp.mean(jnp.logaddexp(d, -d) - _LOG2)
    ref_none = jnp.logaddexp(d, -d) - _LOG2

    # Kernel: 'mean' reduction (module default).
    loss = jax.block_until_ready(log_cosh_loss(src, tgt, reduction="mean"))
    assert jnp.allclose(loss, ref_mean, atol=1e-5, rtol=1e-5), (loss, ref_mean)

    # Kernel: 'none' reduction.
    loss_none = jax.block_until_ready(log_cosh_loss(src, tgt, reduction="none"))
    assert loss_none.shape == shape
    assert jnp.allclose(loss_none, ref_none, atol=1e-5, rtol=1e-5)

    # Ragged shape (element count not a multiple of a lane tile) exercises the
    # mask-free zero-padding path.
    shape2 = (2, 3, 17, 13)
    src2 = jax.random.normal(k_src, shape2, dtype=jnp.float32)
    tgt2 = jax.random.normal(k_tgt, shape2, dtype=jnp.float32)
    loss2 = jax.block_until_ready(log_cosh_loss(src2, tgt2, reduction="mean"))
    d2 = src2 - tgt2 + _EPS
    ref2 = jnp.mean(jnp.logaddexp(d2, -d2) - _LOG2)
    assert jnp.allclose(loss2, ref2, atol=1e-5, rtol=1e-5), (loss2, ref2)

    print("KERNEL_OK")
</pallas_src>

<mosaic_0001>
module attributes {stable_mosaic.version = 11 : i64} {
  func.func @_mean_kernel(%arg0: i32, %arg1: i32, %arg2: memref<16x128xf32, #tpu.memory_space<vmem>>, %arg3: memref<16x128xf32, #tpu.memory_space<vmem>>, %arg4: memref<1x1x128xf32, #tpu.memory_space<vmem>>, %arg5: memref<1x128xf32, #tpu.memory_space<vmem>>) attributes {dimension_semantics = [#tpu.dimension_semantics<parallel>, #tpu.dimension_semantics<arbitrary>], iteration_bounds = array<i64: 1, 1>, scalar_prefetch = 0 : i64, scratch_operands = 1 : i64, tpu.core_type = #tpu.core_type<tc>, window_params = [{transform_indices = @transform_0, window_bounds = array<i64: 16, 128>}, {transform_indices = @transform_1, window_bounds = array<i64: 16, 128>}, {transform_indices = @transform_2, window_bounds = array<i64: 1, 1, 128>}]} {
    %c0_i32 = arith.constant 0 : i32
    %0 = arith.cmpi eq, %arg1, %c0_i32 : i32
    %1 = arith.extui %0 : i1 to i32
    %c0_i32_0 = arith.constant 0 : i32
    %2 = arith.cmpi ne, %1, %c0_i32_0 : i32
    scf.if %2 {
      %cst_13 = arith.constant 0.000000e+00 : f32
      %24 = vector.broadcast %cst_13 : f32 to vector<1x128xf32>
      %c0_14 = arith.constant 0 : index
      %c0_15 = arith.constant 0 : index
      %25 = vector.load %arg5[%c0_14, %c0_15] : memref<1x128xf32, #tpu.memory_space<vmem>>, vector<1x128xf32>
      tpu.vector_store %arg5[%c0_14, %c0_15], %24 {strides = array<i32>} : memref<1x128xf32, #tpu.memory_space<vmem>>, vector<1x128xf32>,
    } else {
    }
    %c0 = arith.constant 0 : index
    %c0_1 = arith.constant 0 : index
    %3 = vector.load %arg2[%c0, %c0_1] : memref<16x128xf32, #tpu.memory_space<vmem>>, vector<16x128xf32>
    %c0_2 = arith.constant 0 : index
    %c0_3 = arith.constant 0 : index
    %4 = vector.load %arg3[%c0_2, %c0_3] : memref<16x128xf32, #tpu.memory_space<vmem>>, vector<16x128xf32>
    %5 = arith.subf %3, %4 : vector<16x128xf32>
    %cst = arith.constant 9.99999996E-13 : f32
    %6 = vector.broadcast %cst : f32 to vector<16x128xf32>
    %7 = arith.addf %5, %6 : vector<16x128xf32>
    %8 = math.absf %7 : vector<16x128xf32>
    %cst_4 = arith.constant -2.000000e+00 : f32
    %9 = vector.broadcast %cst_4 : f32 to vector<16x128xf32>
    %10 = arith.mulf %9, %8 : vector<16x128xf32>
    %11 = math.exp %10 : vector<16x128xf32>
    %12 = math.log1p %11 : vector<16x128xf32>
    %13 = arith.addf %8, %12 : vector<16x128xf32>
    %cst_5 = arith.constant 0.693147182 : f32
    %14 = vector.broadcast %cst_5 : f32 to vector<16x128xf32>
    %15 = arith.subf %13, %14 : vector<16x128xf32>
    %c0_6 = arith.constant 0 : index
    %c0_7 = arith.constant 0 : index
    %16 = vector.load %arg5[%c0_6, %c0_7] : memref<1x128xf32, #tpu.memory_space<vmem>>, vector<1x128xf32>
    %cst_8 = arith.constant dense<0.000000e+00> : vector<128xf32>
    %17 = vector.multi_reduction <add>, %15, %cst_8 [0] : vector<16x128xf32> to vector<128xf32>
    %18 = vector.shape_cast %17 : vector<128xf32> to vector<1x128xf32>
    %19 = arith.addf %16, %18 : vector<1x128xf32>
    %c0_9 = arith.constant 0 : index
    %c0_10 = arith.constant 0 : index
    %20 = vector.load %arg5[%c0_9, %c0_10] : memref<1x128xf32, #tpu.memory_space<vmem>>, vector<1x128xf32>
    tpu.vector_store %arg5[%c0_9, %c0_10], %19 {strides = array<i32>} : memref<1x128xf32, #tpu.memory_space<vmem>>, vector<1x128xf32>,
    %c0_i32_11 = arith.constant 0 : i32
    %21 = arith.cmpi eq, %arg1, %c0_i32_11 : i32
    %22 = arith.extui %21 : i1 to i32
    %c0_i32_12 = arith.constant 0 : i32
    %23 = arith.cmpi ne, %22, %c0_i32_12 : i32
    scf.if %23 {
      %c0_13 = arith.constant 0 : index
      %c0_14 = arith.constant 0 : index
      %24 = vector.load %arg5[%c0_13, %c0_14] : memref<1x128xf32, #tpu.memory_space<vmem>>, vector<1x128xf32>
      %c0_15 = arith.constant 0 : index
      %c0_16 = arith.constant 0 : index
      %c0_17 = arith.constant 0 : index
      %25 = vector.load %arg4[%c0_15, %c0_16, %c0_17] : memref<1x1x128xf32, #tpu.memory_space<vmem>>, vector<1x1x128xf32>
      %26 = vector.shape_cast %25 : vector<1x1x128xf32> to vector<1x128xf32>
      %27 = vector.shape_cast %24 : vector<1x128xf32> to vector<1x1x128xf32>
      tpu.vector_store %arg4[%c0_15, %c0_16, %c0_17], %27 {strides = array<i32>} : memref<1x1x128xf32, #tpu.memory_space<vmem>>, vector<1x1x128xf32>,
    } else {
    }
    return
  }
  func.func @transform_0(%arg0: i32, %arg1: i32) -> (i32, i32) {
    %c1_i32 = arith.constant 1 : i32
    %0 = arith.muli %arg0, %c1_i32 : i32
    %1 = arith.addi %0, %arg1 : i32
    %c0_i32 = arith.constant 0 : i32
    %c0_i32_0 = arith.constant 0 : i32
    return %1, %c0_i32 : i32, i32
  }
  func.func @transform_1(%arg0: i32, %arg1: i32) -> (i32, i32) {
    %c1_i32 = arith.constant 1 : i32
    %0 = arith.muli %arg0, %c1_i32 : i32
    %1 = arith.addi %0, %arg1 : i32
    %c0_i32 = arith.constant 0 : i32
    %c0_i32_0 = arith.constant 0 : i32
    return %1, %c0_i32 : i32, i32
  }
  func.func @transform_2(%arg0: i32, %arg1: i32) -> (i32, i32, i32) {
    %c0_i32 = arith.constant 0 : i32
    %c0_i32_0 = arith.constant 0 : i32
    %c0_i32_1 = arith.constant 0 : i32
    return %arg0, %c0_i32, %c0_i32_0 : i32, i32, i32
  }
}

</mosaic_0001>

<llo_original>
// kernel: tpu_custom_call.1
$region0: #{tpu_custom_call.1}
  #allocation0 [shape = 'u32[]', space=smem, size = 0x4, offset = 0x4, fixed_abs, tag = 'smem constant byte address 0x4 - core index']
  #allocation1 [shape = 'u32[72,128]{1,0:T(1,128)}', space=vmem, size = 0x9000, scoped, tag = 'internal scratch']
  #allocation2 [shape = 'f32[1,128]{1,0:T(1,128)}', space=vmem, size = 0x200, scoped, tag = 'scratch operand']
  %s0 = inlined_call_operand.hbm [shape: f32[16,128], index: 0, kind: input, shape index: {}]
  %s1 = inlined_call_operand.hbm [shape: f32[16,128], index: 1, kind: input, shape index: {}]
  %s2 = inlined_call_operand.hbm [shape: f32[1,1,128], index: 2, kind: output, shape index: {}]
  %s3 = sld [smem:[#allocation0]]
  $region34: #{tpu_custom_call.1} parent=0
    _
  %s5 = ssub.s32 1, %s3
  %s6 = scalar_select 0, %s5, %s3
  $region1: #{tpu_custom_call.1} parent=0
    #allocation3 [shape = 'u8[8192]{0}', space=vmem, size = 0x2000, scoped, tag = 'input window, operand 0, single buffered']
    #allocation4 [shape = 's32[1]{0}', space=sflag, size = 0x4, scoped, tag = 'scoped memory for tpu_custom_call.1']
    #allocation5 [shape = 's32[1]{0}', space=sflag, size = 0x4, scoped, tag = 'scoped memory for tpu_custom_call.1']
    #allocation6 [shape = 'u8[8192]{0}', space=vmem, size = 0x2000, scoped, tag = 'input window, operand 1, single buffered']
    #allocation7 [shape = 's32[1]{0}', space=sflag, size = 0x4, scoped, tag = 'scoped memory for tpu_custom_call.1']
    #allocation8 [shape = 'u8[512]{0}', space=vmem, size = 0x400, scoped, tag = 'output window, operand 0, single buffered']
    %7 = vsyncpa [#allocation4], 0
    %8 = vsyncpa [#allocation7], 0
    %9 = vsyncpa [#allocation5], 0
    // Predicated region
    $region2: #{tpu_custom_call.1} parent=1 // pred_check
      _
    $region3: #{tpu_custom_call.1} parent=1 // pred_check_branch
      %11 = sbr.rel (0) target = $region5
    $region4: #{tpu_custom_call.1} parent=1 // pred_region
      %s12 = sadd.s32 0, 0
      %s13 = smul.u32 2, %s12
      %15 = vsyncadd [#allocation4], 0
      %s16 = smul.addr %s13, 8
      %s17 = scalar_lea.hbm %s0, %s16
      %s18 = sshll.u32 %s17, 4
      %s19 = int_to_ptr.hbm [resolvable:$true] %s18
      %s20 = sshll.u32 [#allocation3], 4
      %s21 = int_to_ptr.vmem [resolvable:$true] %s20
      %26 = dma.hbm_to_vmem [thread:$0]  %s19, 256, %s21, [#allocation4], 128, 128, 8
    $region5: #{tpu_custom_call.1} parent=1 // pred_fallthru
      _
    // Predicated region
    $region6: #{tpu_custom_call.1} parent=1 // pred_check
      _
    $region7: #{tpu_custom_call.1} parent=1 // pred_check_branch
      %28 = sbr.rel (0) target = $region9
    $region8: #{tpu_custom_call.1} parent=1 // pred_region
      %s29 = sadd.s32 0, 0
      %s30 = smul.u32 2, %s29
      %32 = vsyncadd [#allocation7], 0
      %s33 = smul.addr %s30, 8
      %s34 = scalar_lea.hbm %s1, %s33
      %s35 = sshll.u32 %s34, 4
      %s36 = int_to_ptr.hbm [resolvable:$true] %s35
      %s37 = sshll.u32 [#allocation6], 4
      %s38 = int_to_ptr.vmem [resolvable:$true] %s37
      %43 = dma.hbm_to_vmem [thread:$0]  %s36, 256, %s38, [#allocation7], 128, 128, 8
    $region9: #{tpu_custom_call.1} parent=1 // pred_fallthru
      _
    // Predicated region
    $region10: #{tpu_custom_call.1} parent=1 // pred_check
      _
    $region11: #{tpu_custom_call.1} parent=1 // pred_check_branch
      %45 = sbr.rel (0) target = $region13
    $region12: #{tpu_custom_call.1} parent=1 // pred_region
      %47 = dma.done [#allocation4], 256
    $region13: #{tpu_custom_call.1} parent=1 // pred_fallthru
      _
    // Predicated region
    $region14: #{tpu_custom_call.1} parent=1 // pred_check
      _
    $region15: #{tpu_custom_call.1} parent=1 // pred_check_branch
      %49 = sbr.rel (0) target = $region17
    $region16: #{tpu_custom_call.1} parent=1 // pred_region
      %51 = dma.done [#allocation7], 256
    $region17: #{tpu_custom_call.1} parent=1 // pred_fallthru
      _
    %s52 = sadd.s32 0, 0
    %s53 = smul.u32 2, %s52
    %s54 = sadd.s32 0, 0
    %s55 = smul.u32 2, %s54
    %p56 = scmp.eq.s32.totalorder 0, 0
    // Predicated region
    $region18: #{tpu_custom_call.1} parent=1 // pred_check
      %p57 = pneg %p56
    $region19: #{tpu_custom_call.1} parent=1 // pred_check_branch
      %59 = sbr.rel (%p57) target = $region21
    $region20: #{tpu_custom_call.1} parent=1 // pred_region
      %60 = vst [vmem:[#allocation2] sm:$0x1] 0.0
    $region21: #{tpu_custom_call.1} parent=1 // pred_fallthru
      _
    %v61 = vld [vmem:[#allocation3] sm:$0xff]
    %v62 = vld [vmem:[#allocation3 + $0x8] sm:$0xff]
    %v63 = vld [vmem:[#allocation6] sm:$0xff]
    %v64 = vld [vmem:[#allocation6 + $0x8] sm:$0xff]
    %v65 = vsub.f32 %v61, %v63
    %v66 = vsub.f32 %v62, %v64
    %v67 = vadd.f32 %v65, 1e-12
    %v68 = vadd.f32 %v66, 1e-12
    %v69 = vand.u32 2147483647, %v67
    %v70 = vand.u32 2147483647, %v68
    %v71 = vmul.f32 %v69, -2.0
    %v72 = vmul.f32 %v70, -2.0
    %v73 = vmul.f32 %v71, 1.442695
    %v74 = vpow.pop %v73
    %v75 = vmul.f32 %v72, 1.442695
    %v76 = vpow.pop %v75
    %v77 = vadd.f32 %v74, 1.0
    %v78 = vlog2.pop %v77
    %v79 = vmul.f32 %v78, 0.6931472
    %v80 = vmul.f32 -0.5, %v74
    %v81 = vadd.f32 %v80, 1.0
    %v82 = vmul.f32 %v81, %v74
    %v83 = vand.u32 2147483647, %v74
    %vm84 = vcmp.lt.f32.partialorder %v83, 0.0004427343
    %v85 = vsel %vm84, %v82, %v79
    %v86 = vadd.f32 %v76, 1.0
    %v87 = vlog2.pop %v86
    %v88 = vmul.f32 %v87, 0.6931472
    %v89 = vmul.f32 -0.5, %v76
    %v90 = vadd.f32 %v89, 1.0
    %v91 = vmul.f32 %v90, %v76
    %v92 = vand.u32 2147483647, %v76
    %vm93 = vcmp.lt.f32.partialorder %v92, 0.0004427343
    %v94 = vsel %vm93, %v91, %v88
    %v95 = vadd.f32 %v69, %v85
    %v96 = vadd.f32 %v70, %v94
    %v97 = vsub.f32 %v95, 0.6931472
    %v98 = vsub.f32 %v96, 0.6931472
    %v99 = vld [vmem:[#allocation2] sm:$0x1]
    %v100 = vadd.f32 %v97, %v98
    %v101 = vrot.slane %v100, 4
    %v102 = vadd.f32 %v100, %v101
    %v103 = vrot.slane %v102, 2
    %v104 = vadd.f32 %v102, %v103
    %v105 = vrot.slane %v104, 1
    %v106 = vadd.f32 %v104, %v105
    %v107 = vadd.f32 %v99, %v106
    %108 = vst [vmem:[#allocation2] sm:$0x1] %v107
    // Predicated region
    $region22: #{tpu_custom_call.1} parent=1 // pred_check
      %p109 = pneg %p56
    $region23: #{tpu_custom_call.1} parent=1 // pred_check_branch
      %111 = sbr.rel (%p109) target = $region25
    $region24: #{tpu_custom_call.1} parent=1 // pred_region
      %v112 = vld [vmem:[#allocation2] sm:$0x1]
      %113 = vst [vmem:[#allocation8] sm:$0x1] %v112
    $region25: #{tpu_custom_call.1} parent=1 // pred_fallthru
      _
    // Predicated region
    $region26: #{tpu_custom_call.1} parent=1 // pred_check
      _
    $region27: #{tpu_custom_call.1} parent=1 // pred_check_branch
      %115 = sbr.rel (0) target = $region29
    $region28: #{tpu_custom_call.1} parent=1 // pred_region
      %117 = vsyncadd [#allocation5], 0
      %s119 = sshll.u32 [#allocation8], 4
      %s120 = int_to_ptr.vmem [resolvable:$true] %s119
      %s121 = sshll.u32 %s2, 4
      %s122 = int_to_ptr.hbm [resolvable:$true] %s121
      %124 = dma.vmem_to_hbm [thread:$0]  %s120, 16, %s122, [#allocation5]
    $region29: #{tpu_custom_call.1} parent=1 // pred_fallthru
      _
    // Predicated region
    $region30: #{tpu_custom_call.1} parent=1 // pred_check
      _
    $region31: #{tpu_custom_call.1} parent=1 // pred_check_branch
      %126 = sbr.rel (0) target = $region33
    $region32: #{tpu_custom_call.1} parent=1 // pred_region
      %128 = dma.done [#allocation5], 16
    $region33: #{tpu_custom_call.1} parent=1 // pred_fallthru
      _
    %129 = vsyncpa [#allocation4], 1
    %130 = vsyncpa [#allocation7], 1
    %131 = vsyncpa [#allocation5], 1

</llo_original>
